<compile_context>
chip_gen: v7x
topology: tpu7x:2x2x1
jax: 0.10.0
libtpu: 0.0.40
codegen_flags: <defaults>
</compile_context>

<pallas_src>
import functools
import numpy as np
import jax
import jax.numpy as jnp
from jax.experimental import pallas as pl
from jax.experimental.pallas import tpu as pltpu

LOG_STD_MIN = -20.0
LOG_STD_MAX = 2.0
PAD = 128  # lane width used for the padded heads / output slab


def _softplus(x):
    # numerically stable softplus using only elementwise ops
    return jnp.maximum(x, 0.0) + jnp.log(1.0 + jnp.exp(-jnp.abs(x)))


def gaussian_actor_kernel(obs_ref, eps_ref,
                          wfe_ref, bfe_ref,
                          w1_ref, b1_ref,
                          wh_ref, bh_ref,
                          out_ref, *, n_act):
    obs = obs_ref[...]          # (TB, obs_dim)
    eps = eps_ref[...]          # (TB, PAD)   zero-padded past n_act

    # feature extractor: Linear + ReLU
    feature = jnp.dot(obs, wfe_ref[...], preferred_element_type=jnp.float32)
    feature = jnp.maximum(feature + bfe_ref[...], 0.0)

    # mlp: Linear + ReLU
    hidden = jnp.dot(feature, w1_ref[...], preferred_element_type=jnp.float32)
    hidden = jnp.maximum(hidden + b1_ref[...], 0.0)

    # fused heads: one matmul -> (TB, 2*PAD); mean in lanes [0:PAD),
    # log_std in lanes [PAD:2*PAD) (both slices are full 128-lane groups).
    heads = jnp.dot(hidden, wh_ref[...], preferred_element_type=jnp.float32)
    heads = heads + bh_ref[...]
    mean = heads[:, :PAD]
    log_std = jnp.clip(heads[:, PAD:], LOG_STD_MIN, LOG_STD_MAX)

    # reparameterized sample (std never materialized separately)
    action = mean + jnp.exp(log_std) * eps

    # Normal(mean, std).log_prob(action) with z == eps exactly (no divide)
    normal_logp = -0.5 * eps * eps - log_std - 0.5 * jnp.log(2.0 * jnp.pi)

    # tanh-squash correction: 2*(log(2) - a - softplus(-2a))
    corr = 2.0 * (jnp.log(2.0) - action - _softplus(-2.0 * action))
    log_p = normal_logp - corr

    lane = jax.lax.broadcasted_iota(jnp.int32, log_p.shape, 1)
    valid = lane < n_act
    logp_sum = jnp.sum(jnp.where(valid, log_p, 0.0), axis=-1, keepdims=True)

    # pack lane-dense output: cols [0:n_act] = tanh(action), col n_act = log_p
    out_ref[...] = jnp.where(lane == n_act, logp_sum, jnp.tanh(action))


def gaussian_actor_forward(obs, eps, params, *, tile_b=256):
    B, obs_dim = obs.shape
    hidden_dim = params["wfe"].shape[1]
    n_act = params["wm"].shape[1]
    assert n_act < PAD

    # Fused + lane-padded head weights/biases: [hidden, 2*PAD]
    wh = jnp.zeros((hidden_dim, 2 * PAD), jnp.float32)
    wh = wh.at[:, :n_act].set(params["wm"]).at[:, PAD:PAD + n_act].set(params["ws"])
    bh = jnp.zeros((1, 2 * PAD), jnp.float32)
    bh = bh.at[:, :n_act].set(params["bm"]).at[:, PAD:PAD + n_act].set(params["bs"])

    # lane-pad eps with zeros (pad columns contribute action=0, masked in logp)
    eps_p = jnp.zeros((B, PAD), jnp.float32).at[:, :n_act].set(eps)

    # batch tiling (sublane-aligned); pad batch to a multiple of the tile
    TB = min(tile_b, B)
    Bp = pl.cdiv(B, TB) * TB
    obs_p = obs
    if Bp != B:
        obs_p = jnp.pad(obs, ((0, Bp - B), (0, 0)))
        eps_p = jnp.pad(eps_p, ((0, Bp - B), (0, 0)))

    grid = (Bp // TB,)
    batch_spec = lambda w: pl.BlockSpec((TB, w), lambda i: (i, 0))
    resident = lambda shp: pl.BlockSpec(shp, lambda i: (0, 0))  # weights stay in VMEM

    out = pl.pallas_call(
        functools.partial(gaussian_actor_kernel, n_act=n_act),
        grid=grid,
        in_specs=[
            batch_spec(obs_dim),                    # obs
            batch_spec(PAD),                        # eps (padded)
            resident((obs_dim, hidden_dim)),        # wfe
            resident((1, hidden_dim)),              # bfe
            resident((hidden_dim, hidden_dim)),     # w1
            resident((1, hidden_dim)),              # b1
            resident((hidden_dim, 2 * PAD)),        # fused head weight
            resident((1, 2 * PAD)),                 # fused head bias
        ],
        out_specs=batch_spec(PAD),
        out_shape=jax.ShapeDtypeStruct((Bp, PAD), jnp.float32),
        compiler_params=pltpu.CompilerParams(
            dimension_semantics=("parallel",)),
    )(obs_p, eps_p,
      params["wfe"], params["bfe"],
      params["w1"], params["b1"],
      wh, bh)

    act = out[:B, :n_act]
    logp = out[:B, n_act]
    return act, logp


def _reference(obs, eps, params):
    feature = jax.nn.relu(obs @ params["wfe"] + params["bfe"])
    hidden = jax.nn.relu(feature @ params["w1"] + params["b1"])
    mean = hidden @ params["wm"] + params["bm"]
    log_std = jnp.clip(hidden @ params["ws"] + params["bs"], LOG_STD_MIN, LOG_STD_MAX)
    std = jnp.exp(log_std)
    action = mean + std * eps
    normal_logp = -0.5 * ((action - mean) / std) ** 2 - log_std - 0.5 * jnp.log(2 * jnp.pi)
    log_p = normal_logp - 2.0 * (jnp.log(2.0) - action - jax.nn.softplus(-2.0 * action))
    return jnp.tanh(action), jnp.sum(log_p, axis=-1)


if __name__ == "__main__":
    B, obs_dim, hidden_dim, n_act = 8, 16, 32, 8

    key = jax.random.PRNGKey(0)
    keys = jax.random.split(key, 8)

    obs = jax.random.normal(keys[0], (B, obs_dim), dtype=jnp.float32)
    eps = jax.random.normal(keys[1], (B, n_act), dtype=jnp.float32)

    def init_w(k, fan_in, fan_out):
        return (jax.random.normal(k, (fan_in, fan_out), dtype=jnp.float32)
                / jnp.sqrt(jnp.float32(fan_in)))

    params = {
        "wfe": init_w(keys[2], obs_dim, hidden_dim),
        "bfe": jnp.zeros((1, hidden_dim), jnp.float32) + 0.01,
        "w1": init_w(keys[3], hidden_dim, hidden_dim),
        "b1": jnp.zeros((1, hidden_dim), jnp.float32) + 0.01,
        "wm": init_w(keys[4], hidden_dim, n_act),
        "bm": jnp.zeros((1, n_act), jnp.float32),
        "ws": init_w(keys[5], hidden_dim, n_act),
        "bs": jnp.zeros((1, n_act), jnp.float32) - 0.5,
    }

    act, logp = gaussian_actor_forward(obs, eps, params)
    jax.block_until_ready((act, logp))

    act_ref, logp_ref = _reference(obs, eps, params)
    np.testing.assert_allclose(np.asarray(act), np.asarray(act_ref), rtol=1e-5, atol=1e-5)
    np.testing.assert_allclose(np.asarray(logp), np.asarray(logp_ref), rtol=1e-4, atol=1e-4)

    print("KERNEL_OK")
</pallas_src>

<mosaic_0001>
module attributes {stable_mosaic.version = 11 : i64} {
  func.func @gaussian_actor_kernel(%arg0: i32, %arg1: memref<8x16xf32, #tpu.memory_space<vmem>>, %arg2: memref<8x128xf32, #tpu.memory_space<vmem>>, %arg3: memref<16x32xf32, #tpu.memory_space<vmem>>, %arg4: memref<1x32xf32, #tpu.memory_space<vmem>>, %arg5: memref<32x32xf32, #tpu.memory_space<vmem>>, %arg6: memref<1x32xf32, #tpu.memory_space<vmem>>, %arg7: memref<32x256xf32, #tpu.memory_space<vmem>>, %arg8: memref<1x256xf32, #tpu.memory_space<vmem>>, %arg9: memref<8x128xf32, #tpu.memory_space<vmem>>) attributes {dimension_semantics = [#tpu.dimension_semantics<parallel>], iteration_bounds = array<i64: 1>, scalar_prefetch = 0 : i64, scratch_operands = 0 : i64, tpu.core_type = #tpu.core_type<tc>, window_params = [{transform_indices = @transform_0, window_bounds = array<i64: 8, 16>}, {transform_indices = @transform_1, window_bounds = array<i64: 8, 128>}, {pipeline_mode = #tpu.pipeline_mode<synchronous>, transform_indices = @transform_2, window_bounds = array<i64: 16, 32>}, {pipeline_mode = #tpu.pipeline_mode<synchronous>, transform_indices = @transform_3, window_bounds = array<i64: 1, 32>}, {pipeline_mode = #tpu.pipeline_mode<synchronous>, transform_indices = @transform_4, window_bounds = array<i64: 32, 32>}, {pipeline_mode = #tpu.pipeline_mode<synchronous>, transform_indices = @transform_5, window_bounds = array<i64: 1, 32>}, {pipeline_mode = #tpu.pipeline_mode<synchronous>, transform_indices = @transform_6, window_bounds = array<i64: 32, 256>}, {pipeline_mode = #tpu.pipeline_mode<synchronous>, transform_indices = @transform_7, window_bounds = array<i64: 1, 256>}, {transform_indices = @transform_8, window_bounds = array<i64: 8, 128>}]} {
    %c0 = arith.constant 0 : index
    %c0_0 = arith.constant 0 : index
    %0 = vector.load %arg1[%c0, %c0_0] : memref<8x16xf32, #tpu.memory_space<vmem>>, vector<8x16xf32>
    %c0_1 = arith.constant 0 : index
    %c0_2 = arith.constant 0 : index
    %1 = vector.load %arg2[%c0_1, %c0_2] : memref<8x128xf32, #tpu.memory_space<vmem>>, vector<8x128xf32>
    %c0_3 = arith.constant 0 : index
    %c0_4 = arith.constant 0 : index
    %2 = vector.load %arg3[%c0_3, %c0_4] : memref<16x32xf32, #tpu.memory_space<vmem>>, vector<16x32xf32>
    %cst = arith.constant dense<0.000000e+00> : vector<8x32xf32>
    %3 = tpu.matmul %0, %2, %cst {dimension_numbers = #tpu.dot_dimension_numbers<[1], [0], [0], [1], [0, 0, 1, 1], [], []>} : vector<8x16xf32>, vector<16x32xf32>, vector<8x32xf32> -> vector<8x32xf32>
    %c0_5 = arith.constant 0 : index
    %c0_6 = arith.constant 0 : index
    %4 = vector.load %arg4[%c0_5, %c0_6] : memref<1x32xf32, #tpu.memory_space<vmem>>, vector<1x32xf32>
    %5 = vector.broadcast %4 : vector<1x32xf32> to vector<8x32xf32>
    %6 = arith.addf %3, %5 : vector<8x32xf32>
    %cst_7 = arith.constant 0.000000e+00 : f32
    %7 = vector.broadcast %cst_7 : f32 to vector<8x32xf32>
    %8 = arith.maximumf %6, %7 : vector<8x32xf32>
    %c0_8 = arith.constant 0 : index
    %c0_9 = arith.constant 0 : index
    %9 = vector.load %arg5[%c0_8, %c0_9] : memref<32x32xf32, #tpu.memory_space<vmem>>, vector<32x32xf32>
    %cst_10 = arith.constant dense<0.000000e+00> : vector<8x32xf32>
    %10 = tpu.matmul %8, %9, %cst_10 {dimension_numbers = #tpu.dot_dimension_numbers<[1], [0], [0], [1], [0, 0, 1, 1], [], []>} : vector<8x32xf32>, vector<32x32xf32>, vector<8x32xf32> -> vector<8x32xf32>
    %c0_11 = arith.constant 0 : index
    %c0_12 = arith.constant 0 : index
    %11 = vector.load %arg6[%c0_11, %c0_12] : memref<1x32xf32, #tpu.memory_space<vmem>>, vector<1x32xf32>
    %12 = vector.broadcast %11 : vector<1x32xf32> to vector<8x32xf32>
    %13 = arith.addf %10, %12 : vector<8x32xf32>
    %cst_13 = arith.constant 0.000000e+00 : f32
    %14 = vector.broadcast %cst_13 : f32 to vector<8x32xf32>
    %15 = arith.maximumf %13, %14 : vector<8x32xf32>
    %c0_14 = arith.constant 0 : index
    %c0_15 = arith.constant 0 : index
    %16 = vector.load %arg7[%c0_14, %c0_15] : memref<32x256xf32, #tpu.memory_space<vmem>>, vector<32x256xf32>
    %cst_16 = arith.constant dense<0.000000e+00> : vector<8x256xf32>
    %17 = tpu.matmul %15, %16, %cst_16 {dimension_numbers = #tpu.dot_dimension_numbers<[1], [0], [0], [1], [0, 0, 1, 1], [], []>} : vector<8x32xf32>, vector<32x256xf32>, vector<8x256xf32> -> vector<8x256xf32>
    %c0_17 = arith.constant 0 : index
    %c0_18 = arith.constant 0 : index
    %18 = vector.load %arg8[%c0_17, %c0_18] : memref<1x256xf32, #tpu.memory_space<vmem>>, vector<1x256xf32>
    %19 = vector.broadcast %18 : vector<1x256xf32> to vector<8x256xf32>
    %20 = arith.addf %17, %19 : vector<8x256xf32>
    %21 = vector.extract_strided_slice %20 {offsets = [0, 0], sizes = [8, 128], strides = [1, 1]} : vector<8x256xf32> to vector<8x128xf32>
    %22 = vector.extract_strided_slice %20 {offsets = [0, 128], sizes = [8, 128], strides = [1, 1]} : vector<8x256xf32> to vector<8x128xf32>
    %cst_19 = arith.constant -2.000000e+01 : f32
    %cst_20 = arith.constant 2.000000e+00 : f32
    %23 = vector.broadcast %cst_19 : f32 to vector<8x128xf32>
    %24 = arith.maximumf %23, %22 : vector<8x128xf32>
    %25 = vector.broadcast %cst_20 : f32 to vector<8x128xf32>
    %26 = arith.minimumf %25, %24 : vector<8x128xf32>
    %27 = math.exp %26 : vector<8x128xf32>
    %28 = arith.mulf %27, %1 : vector<8x128xf32>
    %29 = arith.addf %21, %28 : vector<8x128xf32>
    %cst_21 = arith.constant -5.000000e-01 : f32
    %30 = vector.broadcast %cst_21 : f32 to vector<8x128xf32>
    %31 = arith.mulf %30, %1 : vector<8x128xf32>
    %32 = arith.mulf %31, %1 : vector<8x128xf32>
    %33 = arith.subf %32, %26 : vector<8x128xf32>
    %cst_22 = arith.constant 6.28318548 : f32
    %34 = math.log %cst_22 : f32
    %cst_23 = arith.constant 5.000000e-01 : f32
    %35 = arith.mulf %cst_23, %34 : f32
    %36 = vector.broadcast %35 : f32 to vector<8x128xf32>
    %37 = arith.subf %33, %36 : vector<8x128xf32>
    %cst_24 = arith.constant 2.000000e+00 : f32
    %38 = math.log %cst_24 : f32
    %39 = vector.broadcast %38 : f32 to vector<8x128xf32>
    %40 = arith.subf %39, %29 : vector<8x128xf32>
    %cst_25 = arith.constant -2.000000e+00 : f32
    %41 = vector.broadcast %cst_25 : f32 to vector<8x128xf32>
    %42 = arith.mulf %41, %29 : vector<8x128xf32>
    %cst_26 = arith.constant 0.000000e+00 : f32
    %43 = vector.broadcast %cst_26 : f32 to vector<8x128xf32>
    %44 = arith.maximumf %42, %43 : vector<8x128xf32>
    %45 = math.absf %42 : vector<8x128xf32>
    %cst_27 = arith.constant 0.000000e+00 : f32
    %46 = vector.broadcast %cst_27 : f32 to vector<8x128xf32>
    %47 = arith.subf %46, %45 : vector<8x128xf32>
    %48 = math.exp %47 : vector<8x128xf32>
    %cst_28 = arith.constant 1.000000e+00 : f32
    %49 = vector.broadcast %cst_28 : f32 to vector<8x128xf32>
    %50 = arith.addf %49, %48 : vector<8x128xf32>
    %51 = math.log %50 : vector<8x128xf32>
    %52 = arith.addf %44, %51 : vector<8x128xf32>
    %53 = arith.subf %40, %52 : vector<8x128xf32>
    %cst_29 = arith.constant 2.000000e+00 : f32
    %54 = vector.broadcast %cst_29 : f32 to vector<8x128xf32>
    %55 = arith.mulf %54, %53 : vector<8x128xf32>
    %56 = arith.subf %37, %55 : vector<8x128xf32>
    %57 = tpu.iota {dimensions = array<i32: 1>} : vector<8x128xi32>
    %c8_i32 = arith.constant 8 : i32
    %58 = vector.broadcast %c8_i32 : i32 to vector<8x128xi32>
    %59 = arith.cmpi slt, %57, %58 : vector<8x128xi32>
    %cst_30 = arith.constant 0.000000e+00 : f32
    %60 = vector.broadcast %cst_30 : f32 to vector<8x128xf32>
    %61 = arith.select %59, %56, %60 : vector<8x128xi1>, vector<8x128xf32>
    %cst_31 = arith.constant dense<0.000000e+00> : vector<8xf32>
    %62 = vector.multi_reduction <add>, %61, %cst_31 [1] : vector<8x128xf32> to vector<8xf32>
    %63 = vector.shape_cast %62 : vector<8xf32> to vector<8x1xf32>
    %c8_i32_32 = arith.constant 8 : i32
    %64 = vector.broadcast %c8_i32_32 : i32 to vector<8x128xi32>
    %65 = arith.cmpi eq, %57, %64 : vector<8x128xi32>
    %66 = math.tanh %29 : vector<8x128xf32>
    %67 = vector.shape_cast %63 : vector<8x1xf32> to vector<8x1xf32>
    %68 = vector.broadcast %67 : vector<8x1xf32> to vector<8x128xf32>
    %69 = arith.select %65, %68, %66 : vector<8x128xi1>, vector<8x128xf32>
    %c0_33 = arith.constant 0 : index
    %c0_34 = arith.constant 0 : index
    %70 = vector.load %arg9[%c0_33, %c0_34] : memref<8x128xf32, #tpu.memory_space<vmem>>, vector<8x128xf32>
    tpu.vector_store %arg9[%c0_33, %c0_34], %69 {strides = array<i32>} : memref<8x128xf32, #tpu.memory_space<vmem>>, vector<8x128xf32>,
    return
  }
  func.func @transform_0(%arg0: i32) -> (i32, i32) {
    %c0_i32 = arith.constant 0 : i32
    %c0_i32_0 = arith.constant 0 : i32
    return %arg0, %c0_i32 : i32, i32
  }
  func.func @transform_1(%arg0: i32) -> (i32, i32) {
    %c0_i32 = arith.constant 0 : i32
    %c0_i32_0 = arith.constant 0 : i32
    return %arg0, %c0_i32 : i32, i32
  }
  func.func @transform_2(%arg0: i32) -> (i32, i32) {
    %c0_i32 = arith.constant 0 : i32
    %c0_i32_0 = arith.constant 0 : i32
    %c0_i32_1 = arith.constant 0 : i32
    return %c0_i32, %c0_i32_0 : i32, i32
  }
  func.func @transform_3(%arg0: i32) -> (i32, i32) {
    %c0_i32 = arith.constant 0 : i32
    %c0_i32_0 = arith.constant 0 : i32
    %c0_i32_1 = arith.constant 0 : i32
    return %c0_i32, %c0_i32_0 : i32, i32
  }
  func.func @transform_4(%arg0: i32) -> (i32, i32) {
    %c0_i32 = arith.constant 0 : i32
    %c0_i32_0 = arith.constant 0 : i32
    %c0_i32_1 = arith.constant 0 : i32
    return %c0_i32, %c0_i32_0 : i32, i32
  }
  func.func @transform_5(%arg0: i32) -> (i32, i32) {
    %c0_i32 = arith.constant 0 : i32
    %c0_i32_0 = arith.constant 0 : i32
    %c0_i32_1 = arith.constant 0 : i32
    return %c0_i32, %c0_i32_0 : i32, i32
  }
  func.func @transform_6(%arg0: i32) -> (i32, i32) {
    %c0_i32 = arith.constant 0 : i32
    %c0_i32_0 = arith.constant 0 : i32
    %c0_i32_1 = arith.constant 0 : i32
    return %c0_i32, %c0_i32_0 : i32, i32
  }
  func.func @transform_7(%arg0: i32) -> (i32, i32) {
    %c0_i32 = arith.constant 0 : i32
    %c0_i32_0 = arith.constant 0 : i32
    %c0_i32_1 = arith.constant 0 : i32
    return %c0_i32, %c0_i32_0 : i32, i32
  }
  func.func @transform_8(%arg0: i32) -> (i32, i32) {
    %c0_i32 = arith.constant 0 : i32
    %c0_i32_0 = arith.constant 0 : i32
    return %arg0, %c0_i32 : i32, i32
  }
}

</mosaic_0001>

<llo_original>
// kernel: tpu_custom_call.1
$region0: #{tpu_custom_call.1}
  #allocation0 [shape = 'u32[]', space=smem, size = 0x4, offset = 0x4, fixed_abs, tag = 'smem constant byte address 0x4 - core index']
  #allocation1 [shape = 'u32[144,128]{1,0:T(1,128)}', space=vmem, size = 0x12000, scoped, tag = 'internal scratch']
  %s0 = inlined_call_operand.hbm [shape: f32[8,16], index: 0, kind: input, shape index: {}]
  %s1 = inlined_call_operand.hbm [shape: f32[8,128], index: 1, kind: input, shape index: {}]
  %s2 = inlined_call_operand.hbm [shape: f32[16,32], index: 2, kind: input, shape index: {}]
  %s3 = inlined_call_operand.vmem [shape: f32[1,32], index: 3, kind: input, shape index: {}]
  %s4 = inlined_call_operand.hbm [shape: f32[32,32], index: 4, kind: input, shape index: {}]
  %s5 = inlined_call_operand.vmem [shape: f32[1,32], index: 5, kind: input, shape index: {}]
  %s6 = inlined_call_operand.hbm [shape: f32[32,256], index: 6, kind: input, shape index: {}]
  %s7 = inlined_call_operand.vmem [shape: f32[1,256], index: 7, kind: input, shape index: {}]
  %s8 = inlined_call_operand.hbm [shape: f32[8,128], index: 8, kind: output, shape index: {}]
  %s9 = sld [smem:[#allocation0]]
  $region62: #{tpu_custom_call.1} parent=0
    _
  %s11 = ssub.s32 1, %s9
  %s12 = scalar_select 0, %s11, %s9
  $region1: #{tpu_custom_call.1} parent=0
    #allocation2 [shape = 'u8[4096]{0}', space=vmem, size = 0x1000, scoped, tag = 'input window, operand 0, single buffered']
    #allocation3 [shape = 's32[1]{0}', space=sflag, size = 0x4, scoped, tag = 'scoped memory for tpu_custom_call.1']
    #allocation4 [shape = 's32[1]{0}', space=sflag, size = 0x4, scoped, tag = 'scoped memory for tpu_custom_call.1']
    #allocation5 [shape = 'u8[4096]{0}', space=vmem, size = 0x1000, scoped, tag = 'input window, operand 1, single buffered']
    #allocation6 [shape = 's32[1]{0}', space=sflag, size = 0x4, scoped, tag = 'scoped memory for tpu_custom_call.1']
    #allocation7 [shape = 'u8[8192]{0}', space=vmem, size = 0x2000, scoped, tag = 'input window, operand 2, single buffered']
    #allocation8 [shape = 'u8[16384]{0}', space=vmem, size = 0x4000, scoped, tag = 'input window, operand 4, single buffered']
    #allocation9 [shape = 's32[1]{0}', space=sflag, size = 0x4, scoped, tag = 'scoped memory for tpu_custom_call.1']
    #allocation10 [shape = 'u8[32768]{0}', space=vmem, size = 0x8000, scoped, tag = 'input window, operand 6, single buffered']
    #allocation11 [shape = 'u8[4096]{0}', space=vmem, size = 0x1000, scoped, tag = 'output window, operand 0, single buffered']
    %13 = vsyncpa [#allocation3], 0
    %14 = vsyncpa [#allocation6], 0
    %15 = vsyncpa [#allocation9], 0
    %16 = vsyncpa [#allocation4], 0
    // Predicated region
    $region2: #{tpu_custom_call.1} parent=1 // pred_check
      _
    $region3: #{tpu_custom_call.1} parent=1 // pred_check_branch
      %18 = sbr.rel (0) target = $region5
    $region4: #{tpu_custom_call.1} parent=1 // pred_region
      %s20 = ssub.s32 128, 128
      %21 = vsyncadd [#allocation3], %s20
      %s23 = sshll.u32 [#allocation2], 4
      %s24 = int_to_ptr.vmem [resolvable:$true] %s23
      %26 = dma.hbm_to_vmem [thread:$0]  %s0, 128, %s24, [#allocation3]
    $region5: #{tpu_custom_call.1} parent=1 // pred_fallthru
      _
    // Predicated region
    $region6: #{tpu_custom_call.1} parent=1 // pred_check
      _
    $region7: #{tpu_custom_call.1} parent=1 // pred_check_branch
      %28 = sbr.rel (0) target = $region9
    $region8: #{tpu_custom_call.1} parent=1 // pred_region
      %s30 = ssub.s32 128, 128
      %31 = vsyncadd [#allocation6], %s30
      %s33 = sshll.u32 [#allocation5], 4
      %s34 = int_to_ptr.vmem [resolvable:$true] %s33
      %36 = dma.hbm_to_vmem [thread:$0]  %s1, 128, %s34, [#allocation6]
    $region9: #{tpu_custom_call.1} parent=1 // pred_fallthru
      _
    // Predicated region
    $region10: #{tpu_custom_call.1} parent=1 // pred_check
      _
    $region11: #{tpu_custom_call.1} parent=1 // pred_check_branch
      %38 = sbr.rel (0) target = $region13
    $region12: #{tpu_custom_call.1} parent=1 // pred_region
      %s40 = ssub.s32 256, 256
      %41 = vsyncadd [#allocation6], %s40
      %s42 = sshll.u32 [#allocation7], 4
      %s43 = int_to_ptr.vmem [resolvable:$true] %s42
      %48 = dma.hbm_to_vmem [thread:$0]  %s2, 256, %s43, [#allocation6], 128, 128, 8
    $region13: #{tpu_custom_call.1} parent=1 // pred_fallthru
      _
    // Predicated region
    $region14: #{tpu_custom_call.1} parent=1 // pred_check
      _
    $region15: #{tpu_custom_call.1} parent=1 // pred_check_branch
      %50 = sbr.rel (0) target = $region17
    $region16: #{tpu_custom_call.1} parent=1 // pred_region
      _
    $region17: #{tpu_custom_call.1} parent=1 // pred_fallthru
      _
    // Predicated region
    $region18: #{tpu_custom_call.1} parent=1 // pred_check
      _
    $region19: #{tpu_custom_call.1} parent=1 // pred_check_branch
      %52 = sbr.rel (0) target = $region21
    $region20: #{tpu_custom_call.1} parent=1 // pred_region
      %s54 = ssub.s32 512, 512
      %55 = vsyncadd [#allocation9], %s54
      %s56 = sshll.u32 [#allocation8], 4
      %s57 = int_to_ptr.vmem [resolvable:$true] %s56
      %62 = dma.hbm_to_vmem [thread:$0]  %s4, 512, %s57, [#allocation9], 128, 128, 8
    $region21: #{tpu_custom_call.1} parent=1 // pred_fallthru
      _
    // Predicated region
    $region22: #{tpu_custom_call.1} parent=1 // pred_check
      _
    $region23: #{tpu_custom_call.1} parent=1 // pred_check_branch
      %64 = sbr.rel (0) target = $region25
    $region24: #{tpu_custom_call.1} parent=1 // pred_region
      _
    $region25: #{tpu_custom_call.1} parent=1 // pred_fallthru
      _
    // Predicated region
    $region26: #{tpu_custom_call.1} parent=1 // pred_check
      _
    $region27: #{tpu_custom_call.1} parent=1 // pred_check_branch
      %66 = sbr.rel (0) target = $region29
    $region28: #{tpu_custom_call.1} parent=1 // pred_region
      %s68 = ssub.s32 1024, 1024
      %69 = vsyncadd [#allocation9], %s68
      %s70 = sshll.u32 [#allocation10], 4
      %s71 = int_to_ptr.vmem [resolvable:$true] %s70
      %76 = dma.hbm_to_vmem [thread:$0]  %s6, 1024, %s71, [#allocation9], 256, 256, 16
    $region29: #{tpu_custom_call.1} parent=1 // pred_fallthru
      _
    // Predicated region
    $region30: #{tpu_custom_call.1} parent=1 // pred_check
      _
    $region31: #{tpu_custom_call.1} parent=1 // pred_check_branch
      %78 = sbr.rel (0) target = $region33
    $region32: #{tpu_custom_call.1} parent=1 // pred_region
      _
    $region33: #{tpu_custom_call.1} parent=1 // pred_fallthru
      _
    // Predicated region
    $region34: #{tpu_custom_call.1} parent=1 // pred_check
      _
    $region35: #{tpu_custom_call.1} parent=1 // pred_check_branch
      %80 = sbr.rel (0) target = $region37
    $region36: #{tpu_custom_call.1} parent=1 // pred_region
      %81 = dma.done [#allocation3], 128
    $region37: #{tpu_custom_call.1} parent=1 // pred_fallthru
      _
    // Predicated region
    $region38: #{tpu_custom_call.1} parent=1 // pred_check
      _
    $region39: #{tpu_custom_call.1} parent=1 // pred_check_branch
      %83 = sbr.rel (0) target = $region41
    $region40: #{tpu_custom_call.1} parent=1 // pred_region
      %84 = dma.done [#allocation6], 128
    $region41: #{tpu_custom_call.1} parent=1 // pred_fallthru
      _
    // Predicated region
    $region42: #{tpu_custom_call.1} parent=1 // pred_check
      _
    $region43: #{tpu_custom_call.1} parent=1 // pred_check_branch
      %86 = sbr.rel (0) target = $region45
    $region44: #{tpu_custom_call.1} parent=1 // pred_region
      %87 = dma.done [#allocation6], 256
    $region45: #{tpu_custom_call.1} parent=1 // pred_fallthru
      _
    // Predicated region
    $region46: #{tpu_custom_call.1} parent=1 // pred_check
      _
    $region47: #{tpu_custom_call.1} parent=1 // pred_check_branch
      %89 = sbr.rel (0) target = $region49
    $region48: #{tpu_custom_call.1} parent=1 // pred_region
      %90 = dma.done [#allocation9], 512
    $region49: #{tpu_custom_call.1} parent=1 // pred_fallthru
      _
    // Predicated region
    $region50: #{tpu_custom_call.1} parent=1 // pred_check
      _
    $region51: #{tpu_custom_call.1} parent=1 // pred_check_branch
      %92 = sbr.rel (0) target = $region53
    $region52: #{tpu_custom_call.1} parent=1 // pred_region
      %93 = dma.done [#allocation9], 1024
    $region53: #{tpu_custom_call.1} parent=1 // pred_fallthru
      _
    %v94 = vld [vmem:[#allocation2] sm:$0xff]
    %v95 = vld [vmem:[#allocation5] sm:$0xff]
    %v96 = vld [vmem:[#allocation7] sm:$0xff]
    %v97 = vld [vmem:[#allocation7 + $0x8] sm:$0xff]
    %v98 = vld [vmem:[%s3] sm:$0x1]
    %v100 = vlaneseq
    %v101 = vshrl.u32 %v100, 7
    %v102 = vsub.s32 0, %v101
    %v103 = vrot.slane %v98, %v102
    %vm105 = vcmask 130048
    %v107 = vsel %vm105, %v94, 0
    %109 = vmatprep.subr.mxu0 0.0
    %110 = vmatpush1.msra.mxu0 %v96
    %111 = vmatprep.subr.mxu0 0.0
    %112 = vmatpush1.msra.mxu0 %v97
    %113 = vmatprep.subr.mxu0 0.0
    %114 = vmatpush1.msra.mxu0 0.0
    %115 = vmatprep.subr.mxu0 0.0
    %116 = vmatpush1.msra.mxu0 0.0
    %117 = vmatprep.subr.mxu0 0.0
    %118 = vmatpush1.msra.mxu0 0.0
    %119 = vmatprep.subr.mxu0 0.0
    %120 = vmatpush1.msra.mxu0 0.0
    %121 = vmatprep.subr.mxu0 0.0
    %122 = vmatpush1.msra.mxu0 0.0
    %123 = vmatprep.subr.mxu0 0.0
    %124 = vmatpush1.msra.mxu0 0.0
    %125 = vmatprep.subr.mxu0 0.0
    %126 = vmatpush1.msra.mxu0 0.0
    %127 = vmatprep.subr.mxu0 0.0
    %128 = vmatpush1.msra.mxu0 0.0
    %129 = vmatprep.subr.mxu0 0.0
    %130 = vmatpush1.msra.mxu0 0.0
    %131 = vmatprep.subr.mxu0 0.0
    %132 = vmatpush1.msra.mxu0 0.0
    %133 = vmatprep.subr.mxu0 0.0
    %134 = vmatpush1.msra.mxu0 0.0
    %135 = vmatprep.subr.mxu0 0.0
    %136 = vmatpush1.msra.mxu0 0.0
    %137 = vmatprep.subr.mxu0 0.0
    %138 = vmatpush1.msra.mxu0 0.0
    %139 = vmatprep.subr.mxu0 0.0
    %140 = vmatpush1.msra.mxu0 0.0
    %141 = vmatprep.subr.mxu0 0.0
    %142 = vmatpush1.msra.mxu0 0.0
    %143 = vmatprep.subr.mxu0 0.0
    %144 = vmatpush1.msra.mxu0 0.0
    %145 = vmatprep.subr.mxu0 0.0
    %146 = vmatpush1.msra.mxu0 0.0
    %147 = vmatprep.subr.mxu0 0.0
    %148 = vmatpush1.msra.mxu0 0.0
    %149 = vmatprep.subr.mxu0 0.0
    %150 = vmatpush1.msra.mxu0 0.0
    %151 = vmatprep.subr.mxu0 0.0
    %152 = vmatpush1.msra.mxu0 0.0
    %153 = vmatprep.subr.mxu0 0.0
    %154 = vmatpush1.msra.mxu0 0.0
    %155 = vmatprep.subr.mxu0 0.0
    %156 = vmatpush1.msra.mxu0 0.0
    %157 = vmatprep.subr.mxu0 0.0
    %158 = vmatpush1.msra.mxu0 0.0
    %159 = vmatprep.subr.mxu0 0.0
    %160 = vmatpush1.msra.mxu0 0.0
    %161 = vmatprep.subr.mxu0 0.0
    %162 = vmatpush1.msra.mxu0 0.0
    %163 = vmatprep.subr.mxu0 0.0
    %164 = vmatpush1.msra.mxu0 0.0
    %165 = vmatprep.subr.mxu0 0.0
    %166 = vmatpush1.msra.mxu0 0.0
    %167 = vmatprep.subr.mxu0 0.0
    %168 = vmatpush1.msra.mxu0 0.0
    %169 = vmatprep.subr.mxu0 0.0
    %170 = vmatpush1.msra.mxu0 0.0
    %171 = vmatprep.subr.mxu0 0.0
    %172 = vmatpush1.msra.mxu0 0.0
    %173 = vmatprep.mubr.f32.mxu0 0.0
    %174 = vmatmul.mubr.f32.gmra.mrb[0].mxu0 %v107
    %v175 = vpop.f32.mrb[0].mxu0
    %v176 = vadd.f32 %v103, %v175
    %v177 = vpop.f32.mrb[0].mxu0
    %178 = vdwg.mxu0
    %v179 = vmax.f32 %v176, 0.0
    %v180 = vld [vmem:[#allocation8] sm:$0xff]
    %v181 = vld [vmem:[#allocation8 + $0x8] sm:$0xff]
    %v182 = vld [vmem:[#allocation8 + $0x10] sm:$0xff]
    %v183 = vld [vmem:[#allocation8 + $0x18] sm:$0xff]
    %v184 = vld [vmem:[%s5] sm:$0x1]
    %v186 = vlaneseq
    %v187 = vshrl.u32 %v186, 7
    %v188 = vsub.s32 0, %v187
    %v189 = vrot.slane %v184, %v188
    %vm191 = vcmask 261120
    %v193 = vsel %vm191, %v179, 0
    %195 = vmatprep.subr.mxu0 0.0
    %196 = vmatpush1.msra.mxu0 %v180
    %197 = vmatprep.subr.mxu0 0.0
    %198 = vmatpush1.msra.mxu0 %v181
    %199 = vmatprep.subr.mxu0 0.0
    %200 = vmatpush1.msra.mxu0 %v182
    %201 = vmatprep.subr.mxu0 0.0
    %202 = vmatpush1.msra.mxu0 %v183
    %203 = vmatprep.subr.mxu0 0.0
    %204 = vmatpush1.msra.mxu0 0.0
    %205 = vmatprep.subr.mxu0 0.0
    %206 = vmatpush1.msra.mxu0 0.0
    %207 = vmatprep.subr.mxu0 0.0
    %208 = vmatpush1.msra.mxu0 0.0
    %209 = vmatprep.subr.mxu0 0.0
    %210 = vmatpush1.msra.mxu0 0.0
    %211 = vmatprep.subr.mxu0 0.0
    %212 = vmatpush1.msra.mxu0 0.0
    %213 = vmatprep.subr.mxu0 0.0
    %214 = vmatpush1.msra.mxu0 0.0
    %215 = vmatprep.subr.mxu0 0.0
    %216 = vmatpush1.msra.mxu0 0.0
    %217 = vmatprep.subr.mxu0 0.0
    %218 = vmatpush1.msra.mxu0 0.0
    %219 = vmatprep.subr.mxu0 0.0
    %220 = vmatpush1.msra.mxu0 0.0
    %221 = vmatprep.subr.mxu0 0.0
    %222 = vmatpush1.msra.mxu0 0.0
    %223 = vmatprep.subr.mxu0 0.0
    %224 = vmatpush1.msra.mxu0 0.0
    %225 = vmatprep.subr.mxu0 0.0
    %226 = vmatpush1.msra.mxu0 0.0
    %227 = vmatprep.subr.mxu0 0.0
    %228 = vmatpush1.msra.mxu0 0.0
    %229 = vmatprep.subr.mxu0 0.0
    %230 = vmatpush1.msra.mxu0 0.0
    %231 = vmatprep.subr.mxu0 0.0
    %232 = vmatpush1.msra.mxu0 0.0
    %233 = vmatprep.subr.mxu0 0.0
    %234 = vmatpush1.msra.mxu0 0.0
    %235 = vmatprep.subr.mxu0 0.0
    %236 = vmatpush1.msra.mxu0 0.0
    %237 = vmatprep.subr.mxu0 0.0
    %238 = vmatpush1.msra.mxu0 0.0
    %239 = vmatprep.subr.mxu0 0.0
    %240 = vmatpush1.msra.mxu0 0.0
    %241 = vmatprep.subr.mxu0 0.0
    %242 = vmatpush1.msra.mxu0 0.0
    %243 = vmatprep.subr.mxu0 0.0
    %244 = vmatpush1.msra.mxu0 0.0
    %245 = vmatprep.subr.mxu0 0.0
    %246 = vmatpush1.msra.mxu0 0.0
    %247 = vmatprep.subr.mxu0 0.0
    %248 = vmatpush1.msra.mxu0 0.0
    %249 = vmatprep.subr.mxu0 0.0
    %250 = vmatpush1.msra.mxu0 0.0
    %251 = vmatprep.subr.mxu0 0.0
    %252 = vmatpush1.msra.mxu0 0.0
    %253 = vmatprep.subr.mxu0 0.0
    %254 = vmatpush1.msra.mxu0 0.0
    %255 = vmatprep.subr.mxu0 0.0
    %256 = vmatpush1.msra.mxu0 0.0
    %257 = vmatprep.subr.mxu0 0.0
    %258 = vmatpush1.msra.mxu0 0.0
    %259 = vmatprep.mubr.f32.mxu0 0.0
    %260 = vmatmul.mubr.f32.gmra.mrb[0].mxu0 %v193
    %v261 = vpop.f32.mrb[0].mxu0
    %v262 = vadd.f32 %v189, %v261
    %v263 = vpop.f32.mrb[0].mxu0
    %264 = vdwg.mxu0
    %v265 = vmax.f32 %v262, 0.0
    %v266 = vld [vmem:[#allocation10] sm:$0xff]
    %v267 = vld [vmem:[#allocation10 + $0x8] sm:$0xff]
    %v268 = vld [vmem:[#allocation10 + $0x10] sm:$0xff]
    %v269 = vld [vmem:[#allocation10 + $0x18] sm:$0xff]
    %v270 = vld [vmem:[#allocation10 + $0x20] sm:$0xff]
    %v271 = vld [vmem:[#allocation10 + $0x28] sm:$0xff]
    %v272 = vld [vmem:[#allocation10 + $0x30] sm:$0xff]
    %v273 = vld [vmem:[#allocation10 + $0x38] sm:$0xff]
    %v274 = vld [vmem:[%s7] sm:$0x3]
    %v276 = vlaneseq
    %v277 = vshrl.u32 %v276, 7
    %v278 = vsub.s32 0, %v277
    %v279 = vrot.slane %v274, %v278
    %v280 = vlaneseq
    %v281 = vshrl.u32 %v280, 7
    %v282 = vsub.s32 1, %v281
    %v283 = vrot.slane %v274, %v282
    %v287 = vsel %vm191, %v265, 0
    %289 = vmatprep.subr.mxu0 %v267
    %290 = vmatpush1.msra.mxu0 %v266
    %291 = vmatprep.subr.mxu0 %v269
    %292 = vmatpush1.msra.mxu0 %v268
    %293 = vmatprep.subr.mxu0 %v271
    %294 = vmatpush1.msra.mxu0 %v270
    %295 = vmatprep.subr.mxu0 %v273
    %296 = vmatpush1.msra.mxu0 %v272
    %297 = vmatprep.subr.mxu0 0.0
    %298 = vmatpush1.msra.mxu0 0.0
    %299 = vmatprep.subr.mxu0 0.0
    %300 = vmatpush1.msra.mxu0 0.0
    %301 = vmatprep.subr.mxu0 0.0
    %302 = vmatpush1.msra.mxu0 0.0
    %303 = vmatprep.subr.mxu0 0.0
    %304 = vmatpush1.msra.mxu0 0.0
    %305 = vmatprep.subr.mxu0 0.0
    %306 = vmatpush1.msra.mxu0 0.0
    %307 = vmatprep.subr.mxu0 0.0
    %308 = vmatpush1.msra.mxu0 0.0
    %309 = vmatprep.subr.mxu0 0.0
    %310 = vmatpush1.msra.mxu0 0.0
    %311 = vmatprep.subr.mxu0 0.0
    %312 = vmatpush1.msra.mxu0 0.0
    %313 = vmatprep.subr.mxu0 0.0
    %314 = vmatpush1.msra.mxu0 0.0
    %315 = vmatprep.subr.mxu0 0.0
    %316 = vmatpush1.msra.mxu0 0.0
    %317 = vmatprep.subr.mxu0 0.0
    %318 = vmatpush1.msra.mxu0 0.0
    %319 = vmatprep.subr.mxu0 0.0
    %320 = vmatpush1.msra.mxu0 0.0
    %321 = vmatprep.subr.mxu0 0.0
    %322 = vmatpush1.msra.mxu0 0.0
    %323 = vmatprep.subr.mxu0 0.0
    %324 = vmatpush1.msra.mxu0 0.0
    %325 = vmatprep.subr.mxu0 0.0
    %326 = vmatpush1.msra.mxu0 0.0
    %327 = vmatprep.subr.mxu0 0.0
    %328 = vmatpush1.msra.mxu0 0.0
    %329 = vmatprep.subr.mxu0 0.0
    %330 = vmatpush1.msra.mxu0 0.0
    %331 = vmatprep.subr.mxu0 0.0
    %332 = vmatpush1.msra.mxu0 0.0
    %333 = vmatprep.subr.mxu0 0.0
    %334 = vmatpush1.msra.mxu0 0.0
    %335 = vmatprep.subr.mxu0 0.0
    %336 = vmatpush1.msra.mxu0 0.0
    %337 = vmatprep.subr.mxu0 0.0
    %338 = vmatpush1.msra.mxu0 0.0
    %339 = vmatprep.subr.mxu0 0.0
    %340 = vmatpush1.msra.mxu0 0.0
    %341 = vmatprep.subr.mxu0 0.0
    %342 = vmatpush1.msra.mxu0 0.0
    %343 = vmatprep.subr.mxu0 0.0
    %344 = vmatpush1.msra.mxu0 0.0
    %345 = vmatprep.subr.mxu0 0.0
    %346 = vmatpush1.msra.mxu0 0.0
    %347 = vmatprep.subr.mxu0 0.0
    %348 = vmatpush1.msra.mxu0 0.0
    %349 = vmatprep.subr.mxu0 0.0
    %350 = vmatpush1.msra.mxu0 0.0
    %351 = vmatprep.subr.mxu0 0.0
    %352 = vmatpush1.msra.mxu0 0.0
    %353 = vmatprep.mubr.f32.mxu0 0.0
    %354 = vmatmul.mubr.f32.gmra.mrb[0].mxu0 %v287
    %v355 = vpop.f32.mrb[0].mxu0
    %v356 = vadd.f32 %v279, %v355
    %v357 = vpop.f32.mrb[0].mxu0
    %v358 = vadd.f32 %v283, %v357
    %359 = vdwg.mxu0
    %v360 = vmax.f32 %v358, -20.0
    %v361 = vmin.f32 %v360, 2.0
    %v362 = vmul.f32 %v361, 1.442695
    %v363 = vpow.pop %v362
    %v364 = vmul.f32 %v363, %v95
    %v365 = vadd.f32 %v356, %v364
    %v366 = vmul.f32 %v95, -0.5
    %v367 = vmul.f32 %v366, %v95
    %v368 = vsub.f32 %v367, %v361
    %v369 = vsub.f32 %v368, 0.9189385
    %v370 = vsub.f32 0.6931472, %v365
    %v371 = vmul.f32 %v365, -2.0
    %v372 = vmax.f32 %v371, 0.0
    %v373 = vand.u32 2147483647, %v371
    %v374 = vsub.f32 0.0, %v373
    %v375 = vmul.f32 %v374, 1.442695
    %v376 = vpow.pop %v375
    %v377 = vadd.f32 %v376, 1.0
    %v378 = vlog2.pop %v377
    %v379 = vmul.f32 %v378, 0.6931472
    %v380 = vadd.f32 %v372, %v379
    %v381 = vsub.f32 %v370, %v380
    %v382 = vmul.f32 %v381, 2.0
    %v383 = vsub.f32 %v369, %v382
    %v384 = vlaneseq
    %v385 = vand.u32 %v384, 127
    %vm386 = vcmp.lt.s32.totalorder %v385, 8
    %v387 = vsel %vm386, %v383, 0.0
    %388 = vadd.xlane.f32.xlu0 %v387
    %v389 = vpop.xlane.xlu0 %388
    %vm390 = vcmp.eq.s32.totalorder %v385, 8
    %v391 = vtanh.pop %v365
    %v392 = vsel %vm390, %v389, %v391
    %393 = vst [vmem:[#allocation11] sm:$0xff] %v392
    // Predicated region
    $region54: #{tpu_custom_call.1} parent=1 // pred_check
      _
    $region55: #{tpu_custom_call.1} parent=1 // pred_check_branch
      %395 = sbr.rel (0) target = $region57
    $region56: #{tpu_custom_call.1} parent=1 // pred_region
      %s397 = ssub.s32 128, 128
      %398 = vsyncadd [#allocation4], %s397
      %s400 = sshll.u32 [#allocation11], 4
      %s401 = int_to_ptr.vmem [resolvable:$true] %s400
      %403 = dma.vmem_to_hbm [thread:$0]  %s401, 128, %s8, [#allocation4]
    $region57: #{tpu_custom_call.1} parent=1 // pred_fallthru
      _
    // Predicated region
    $region58: #{tpu_custom_call.1} parent=1 // pred_check
      _
    $region59: #{tpu_custom_call.1} parent=1 // pred_check_branch
      %405 = sbr.rel (0) target = $region61
    $region60: #{tpu_custom_call.1} parent=1 // pred_region
      %406 = dma.done [#allocation4], 128
    $region61: #{tpu_custom_call.1} parent=1 // pred_fallthru
      _
    %407 = vsyncpa [#allocation3], 1
    %408 = vsyncpa [#allocation6], 1
    %409 = vsyncpa [#allocation9], 1
    %410 = vsyncpa [#allocation4], 1

</llo_original>
